<compile_context>
chip_gen: v7x
topology: tpu7x:2x2x1
jax: 0.10.0
libtpu: 0.0.40
codegen_flags: <defaults>
</compile_context>

<pallas_src>
import functools

import jax
import jax.numpy as jnp
from jax import lax
from jax.experimental import pallas as pl
from jax.experimental.pallas import tpu as pltpu


# ---------------------------------------------------------------------------
# Pass 1: per-channel batch statistics (sum, sum of squares)
# ---------------------------------------------------------------------------
def _stats_kernel(x_ref, o_ref, acc_ref):
    """Accumulate per-channel sum / sum-of-squares over the batch.

    x block:  (B, C, H*W)  f32
    acc_ref:  (2, C, H*W)  f32 VMEM scratch (full-lane accumulation)
    o_ref:    (C, 2)       f32 -- written once on the last grid step
    """
    step = pl.program_id(0)
    x = x_ref[...]                                   # (B, C, HW) f32

    @pl.when(step == 0)
    def _():
        acc_ref[...] = jnp.zeros_like(acc_ref)

    # Reduce over the B images in this block before touching the accumulator.
    acc_ref[0] += jnp.sum(x, axis=0)
    acc_ref[1] += jnp.sum(x * x, axis=0)

    @pl.when(step == pl.num_programs(0) - 1)
    def _():
        s = jnp.sum(acc_ref[0], axis=-1, keepdims=True)    # (C, 1)
        ss = jnp.sum(acc_ref[1], axis=-1, keepdims=True)   # (C, 1)
        o_ref[...] = jnp.concatenate([s, ss], axis=-1)     # (C, 2)


# ---------------------------------------------------------------------------
# Pass 2: fused BN(affine) + ReLU + 3x3 conv (9 rolled-tap matmuls) + concat
# ---------------------------------------------------------------------------
def _block_kernel(H, W, C, Cout, B, x_ref, sb_ref, w_ref, m_ref, o_ref):
    """B images per grid step.

    x block:  (B, C, H*W)        f32 (channels in sublanes, H*W in lanes)
    sb block: (C, 2)             f32 [:,0]=scale, [:,1]=bias (folded BN)
    w block:  (9, Cout, C)       f32 per-tap weights, tap = (kh*3 + kw)
    m block:  (9, H*W)           f32 boundary-validity masks per tap
    o block:  (B, C+Cout, H*W)   f32
    """
    HW = H * W
    scale = sb_ref[:, 0:1]                         # (C, 1)
    bias = sb_ref[:, 1:2]                          # (C, 1)
    taps = [(dh, dw) for dh in (-1, 0, 1) for dw in (-1, 0, 1)]

    def process(b):
        x_img = x_ref[b]                                     # (C, HW) f32
        # BatchNorm (folded scale/bias) + ReLU, f32 on the VPU.
        a = jnp.maximum(x_img * scale + bias, 0.0)           # (C, HW)

        conv = jnp.zeros((Cout, HW), jnp.float32)
        for t, (dh, dw) in enumerate(taps):
            s = dh * W + dw
            if s == 0:
                tap = a                                      # center tap
            else:
                # tap[i] = a[i + s] (lane rotation on the XLU), wrapped /
                # out-of-image positions zeroed by the precomputed f32 mask.
                tap = pltpu.roll(a, shift=(-s) % HW, axis=1)
                tap = tap * m_ref[t:t + 1, :]                # (C, HW)
            conv = conv + jnp.dot(w_ref[t], tap,
                                  preferred_element_type=jnp.float32)

        # torch.cat([x, out], dim=1): two direct stores, no concat temp.
        o_ref[b, :C, :] = x_img.astype(o_ref.dtype)
        o_ref[b, C:, :] = conv.astype(o_ref.dtype)

    if B == 1:
        process(0)
    else:
        def body(b, carry):
            process(b)
            return carry
        lax.fori_loop(0, B, body, 0, unroll=(B <= 4))


# ---------------------------------------------------------------------------
# Helpers
# ---------------------------------------------------------------------------
def _vmem_capacity_bytes():
    try:
        return int(pltpu.get_tpu_info().vmem_capacity_bytes)
    except Exception:
        return 64 * 1024 * 1024        # conservative (v7x-sized) fallback


def _pick_images_per_step(N, per_image_bytes, budget_bytes, min_steps=2):
    """Largest divisor of N whose double-buffered block fits the budget,
    preferring a grid of >= min_steps so both v7x TensorCores get work."""
    divisors = [d for d in range(1, N + 1) if N % d == 0]
    fit = [d for d in divisors if 2 * d * per_image_bytes <= budget_bytes]
    if not fit:
        fit = [1]
    pref = [d for d in fit if N // d >= min_steps]
    return max(pref) if pref else max(fit)


# ---------------------------------------------------------------------------
# Wrapper
# ---------------------------------------------------------------------------
def basic_block_forward(x_nchw, gamma, beta, conv_w, eps=1e-5, droprate=0.0):
    """x_nchw: (N, C, H, W) f32; conv_w: (Cout, C, 3, 3). Returns (N, C+Cout, H, W)."""
    if droprate > 0.0:
        # TODO(synk): dropout (training) not implemented; module default is 0.0.
        raise NotImplementedError("dropRate > 0 not supported in this kernel")

    N, C, H, W = x_nchw.shape
    Cout = conv_w.shape[0]
    HW = H * W

    # Free reshape: stays in NCHW memory order, channels->sublanes, H*W->lanes.
    x = x_nchw.reshape(N, C, HW).astype(jnp.float32)

    # Per-chip VMEM sizing: ~48 MiB limit on v7x (64 MiB physical), ~96 MiB on
    # v5e/v6e (128 MiB physical); blocks capped at ~40% of the limit.
    vmem_cap = _vmem_capacity_bytes()
    vmem_limit = int(min((vmem_cap * 3) // 4, 100 * 1024 * 1024))
    per_image_bytes = (C * HW + (C + Cout) * HW) * 4
    B = _pick_images_per_step(N, per_image_bytes, int(0.4 * vmem_limit))
    nb = N // B

    # ---- pass 1: batch statistics (training-mode BatchNorm) ----
    # Grid axis is a sequential reduction over the batch -> "arbitrary".
    stats = pl.pallas_call(
        _stats_kernel,
        out_shape=jax.ShapeDtypeStruct((C, 2), jnp.float32),
        grid_spec=pltpu.PrefetchScalarGridSpec(
            num_scalar_prefetch=0,
            grid=(nb,),
            in_specs=[pl.BlockSpec((B, C, HW), lambda n: (n, 0, 0))],
            out_specs=pl.BlockSpec((C, 2), lambda n: (0, 0)),
            scratch_shapes=[pltpu.VMEM((2, C, HW), jnp.float32)],
        ),
        compiler_params=pltpu.CompilerParams(
            dimension_semantics=("arbitrary",),
            vmem_limit_bytes=vmem_limit),
    )(x)

    cnt = float(N * HW)
    mean = stats[:, 0] / cnt
    # NOTE: E[x^2] - E[x]^2 in f32; adequate for roughly centered inputs.
    var = stats[:, 1] / cnt - mean * mean          # biased var (PyTorch training)
    scale = gamma.astype(jnp.float32) / jnp.sqrt(var + eps)
    bias = beta.astype(jnp.float32) - mean * scale
    sb = jnp.stack([scale, bias], axis=-1)         # (C, 2) f32

    # conv weight (Cout, C, 3, 3) -> (9, Cout, C), tap index = kh*3 + kw.
    w_taps = jnp.transpose(conv_w.astype(jnp.float32), (2, 3, 0, 1))
    w_taps = w_taps.reshape(9, Cout, C)

    # Loop-invariant boundary masks, one (HW,) row per tap, f32 {0,1}.
    hh = jnp.arange(HW, dtype=jnp.int32) // W
    ww = jnp.arange(HW, dtype=jnp.int32) % W
    mask_rows = []
    for dh in (-1, 0, 1):
        for dw in (-1, 0, 1):
            valid = ((hh + dh >= 0) & (hh + dh < H) &
                     (ww + dw >= 0) & (ww + dw < W))
            mask_rows.append(valid.astype(jnp.float32))
    masks = jnp.stack(mask_rows, axis=0)           # (9, HW)

    # ---- pass 2: fused BN + ReLU + conv3x3 + concat ----
    kernel = functools.partial(_block_kernel, H, W, C, Cout, B)
    out = pl.pallas_call(
        kernel,
        out_shape=jax.ShapeDtypeStruct((N, C + Cout, HW), jnp.float32),
        grid_spec=pltpu.PrefetchScalarGridSpec(
            num_scalar_prefetch=0,
            grid=(nb,),
            in_specs=[
                pl.BlockSpec((B, C, HW), lambda n: (n, 0, 0)),
                pl.BlockSpec((C, 2), lambda n: (0, 0)),          # invariant
                pl.BlockSpec((9, Cout, C), lambda n: (0, 0, 0)),  # invariant
                pl.BlockSpec((9, HW), lambda n: (0, 0)),          # invariant
            ],
            out_specs=pl.BlockSpec((B, C + Cout, HW), lambda n: (n, 0, 0)),
        ),
        compiler_params=pltpu.CompilerParams(
            dimension_semantics=("parallel",),     # images independent
            vmem_limit_bytes=vmem_limit),
    )(x, sb, w_taps, masks)

    # Free reshape back to NCHW.
    return out.reshape(N, C + Cout, H, W)


# ---------------------------------------------------------------------------
# Pure-JAX reference (training-mode BN), for verification.
# ---------------------------------------------------------------------------
def _reference(x, gamma, beta, conv_w, eps=1e-5):
    mean = jnp.mean(x, axis=(0, 2, 3), keepdims=True)
    var = jnp.var(x, axis=(0, 2, 3), keepdims=True)
    xn = (x - mean) / jnp.sqrt(var + eps)
    xn = xn * gamma[None, :, None, None] + beta[None, :, None, None]
    a = jnp.maximum(xn, 0.0)
    out = lax.conv_general_dilated(
        a, conv_w, window_strides=(1, 1), padding=((1, 1), (1, 1)),
        dimension_numbers=("NCHW", "OIHW", "NCHW"))
    return jnp.concatenate([x, out], axis=1)


if __name__ == "__main__":
    N, C, H, W = 2, 4, 16, 16
    Cout = 8

    key = jax.random.PRNGKey(0)
    kx, kg, kb, kw = jax.random.split(key, 4)
    x = jax.random.normal(kx, (N, C, H, W), dtype=jnp.float32)
    gamma = 1.0 + 0.1 * jax.random.normal(kg, (C,), dtype=jnp.float32)
    beta = 0.1 * jax.random.normal(kb, (C,), dtype=jnp.float32)
    # kaiming-like deterministic conv init (bias=False in the module)
    conv_w = jax.random.normal(kw, (Cout, C, 3, 3), dtype=jnp.float32)
    conv_w = conv_w * jnp.sqrt(2.0 / (9.0 * C))

    out = basic_block_forward(x, gamma, beta, conv_w)
    out = jax.block_until_ready(out)

    assert out.shape == (N, C + Cout, H, W), out.shape

    ref = _reference(x, gamma, beta, conv_w)
    err = float(jnp.max(jnp.abs(out - ref)))
    assert jnp.allclose(out, ref, atol=3e-2, rtol=3e-2), err

    print("KERNEL_OK")
</pallas_src>

<mosaic_0001>
module attributes {stable_mosaic.version = 11 : i64} {
  func.func @_stats_kernel(%arg0: i32, %arg1: memref<1x4x256xf32, #tpu.memory_space<vmem>>, %arg2: memref<4x2xf32, #tpu.memory_space<vmem>>, %arg3: memref<2x4x256xf32, #tpu.memory_space<vmem>>) attributes {dimension_semantics = [#tpu.dimension_semantics<arbitrary>], iteration_bounds = array<i64: 2>, scalar_prefetch = 0 : i64, scratch_operands = 1 : i64, tpu.core_type = #tpu.core_type<tc>, window_params = [{transform_indices = @transform_0, window_bounds = array<i64: 1, 4, 256>}, {pipeline_mode = #tpu.pipeline_mode<synchronous>, transform_indices = @transform_1, window_bounds = array<i64: 4, 2>}]} {
    %c0 = arith.constant 0 : index
    %c0_0 = arith.constant 0 : index
    %c0_1 = arith.constant 0 : index
    %0 = vector.load %arg1[%c0, %c0_0, %c0_1] : memref<1x4x256xf32, #tpu.memory_space<vmem>>, vector<1x4x256xf32>
    %c0_i32 = arith.constant 0 : i32
    %1 = arith.cmpi eq, %arg0, %c0_i32 : i32
    %2 = arith.extui %1 : i1 to i32
    %c0_i32_2 = arith.constant 0 : i32
    %3 = arith.cmpi ne, %2, %c0_i32_2 : i32
    scf.if %3 {
      %cst_16 = arith.constant 0.000000e+00 : f32
      %22 = vector.broadcast %cst_16 : f32 to vector<2x4x256xf32>
      %c0_17 = arith.constant 0 : index
      %c0_18 = arith.constant 0 : index
      %c0_19 = arith.constant 0 : index
      %23 = vector.load %arg3[%c0_17, %c0_18, %c0_19] : memref<2x4x256xf32, #tpu.memory_space<vmem>>, vector<2x4x256xf32>
      tpu.vector_store %arg3[%c0_17, %c0_18, %c0_19], %22 {strides = array<i32>} : memref<2x4x256xf32, #tpu.memory_space<vmem>>, vector<2x4x256xf32>,
    } else {
    }
    %c0_3 = arith.constant 0 : index
    %c0_4 = arith.constant 0 : index
    %c0_5 = arith.constant 0 : index
    %4 = vector.load %arg3[%c0_3, %c0_4, %c0_5] : memref<2x4x256xf32, #tpu.memory_space<vmem>>, vector<1x4x256xf32>
    %5 = vector.shape_cast %4 : vector<1x4x256xf32> to vector<4x256xf32>
    %cst = arith.constant dense<0.000000e+00> : vector<4x256xf32>
    %6 = vector.multi_reduction <add>, %0, %cst [0] : vector<1x4x256xf32> to vector<4x256xf32>
    %7 = arith.addf %5, %6 : vector<4x256xf32>
    %c0_6 = arith.constant 0 : index
    %c0_7 = arith.constant 0 : index
    %c0_8 = arith.constant 0 : index
    %8 = vector.load %arg3[%c0_6, %c0_7, %c0_8] : memref<2x4x256xf32, #tpu.memory_space<vmem>>, vector<1x4x256xf32>
    %9 = vector.shape_cast %8 : vector<1x4x256xf32> to vector<4x256xf32>
    %10 = vector.shape_cast %7 : vector<4x256xf32> to vector<1x4x256xf32>
    tpu.vector_store %arg3[%c0_6, %c0_7, %c0_8], %10 {strides = array<i32>} : memref<2x4x256xf32, #tpu.memory_space<vmem>>, vector<1x4x256xf32>,
    %c1 = arith.constant 1 : index
    %c0_9 = arith.constant 0 : index
    %c0_10 = arith.constant 0 : index
    %11 = vector.load %arg3[%c1, %c0_9, %c0_10] : memref<2x4x256xf32, #tpu.memory_space<vmem>>, vector<1x4x256xf32>
    %12 = vector.shape_cast %11 : vector<1x4x256xf32> to vector<4x256xf32>
    %13 = arith.mulf %0, %0 : vector<1x4x256xf32>
    %cst_11 = arith.constant dense<0.000000e+00> : vector<4x256xf32>
    %14 = vector.multi_reduction <add>, %13, %cst_11 [0] : vector<1x4x256xf32> to vector<4x256xf32>
    %15 = arith.addf %12, %14 : vector<4x256xf32>
    %c1_12 = arith.constant 1 : index
    %c0_13 = arith.constant 0 : index
    %c0_14 = arith.constant 0 : index
    %16 = vector.load %arg3[%c1_12, %c0_13, %c0_14] : memref<2x4x256xf32, #tpu.memory_space<vmem>>, vector<1x4x256xf32>
    %17 = vector.shape_cast %16 : vector<1x4x256xf32> to vector<4x256xf32>
    %18 = vector.shape_cast %15 : vector<4x256xf32> to vector<1x4x256xf32>
    tpu.vector_store %arg3[%c1_12, %c0_13, %c0_14], %18 {strides = array<i32>} : memref<2x4x256xf32, #tpu.memory_space<vmem>>, vector<1x4x256xf32>,
    %c1_i32 = arith.constant 1 : i32
    %19 = arith.cmpi eq, %arg0, %c1_i32 : i32
    %20 = arith.extui %19 : i1 to i32
    %c0_i32_15 = arith.constant 0 : i32
    %21 = arith.cmpi ne, %20, %c0_i32_15 : i32
    scf.if %21 {
      %c0_16 = arith.constant 0 : index
      %c0_17 = arith.constant 0 : index
      %c0_18 = arith.constant 0 : index
      %22 = vector.load %arg3[%c0_16, %c0_17, %c0_18] : memref<2x4x256xf32, #tpu.memory_space<vmem>>, vector<1x4x256xf32>
      %23 = vector.shape_cast %22 : vector<1x4x256xf32> to vector<4x256xf32>
      %cst_19 = arith.constant dense<0.000000e+00> : vector<4xf32>
      %24 = vector.multi_reduction <add>, %23, %cst_19 [1] : vector<4x256xf32> to vector<4xf32>
      %25 = vector.shape_cast %24 : vector<4xf32> to vector<4x1xf32>
      %c1_20 = arith.constant 1 : index
      %c0_21 = arith.constant 0 : index
      %c0_22 = arith.constant 0 : index
      %26 = vector.load %arg3[%c1_20, %c0_21, %c0_22] : memref<2x4x256xf32, #tpu.memory_space<vmem>>, vector<1x4x256xf32>
      %27 = vector.shape_cast %26 : vector<1x4x256xf32> to vector<4x256xf32>
      %cst_23 = arith.constant dense<0.000000e+00> : vector<4xf32>
      %28 = vector.multi_reduction <add>, %27, %cst_23 [1] : vector<4x256xf32> to vector<4xf32>
      %29 = vector.shape_cast %28 : vector<4xf32> to vector<4x1xf32>
      %30 = tpu.concatenate %25, %29 in 1 : vector<4x1xf32>, vector<4x1xf32> -> vector<4x2xf32>
      %c0_24 = arith.constant 0 : index
      %c0_25 = arith.constant 0 : index
      %31 = vector.load %arg2[%c0_24, %c0_25] : memref<4x2xf32, #tpu.memory_space<vmem>>, vector<4x2xf32>
      tpu.vector_store %arg2[%c0_24, %c0_25], %30 {strides = array<i32>} : memref<4x2xf32, #tpu.memory_space<vmem>>, vector<4x2xf32>,
    } else {
    }
    return
  }
  func.func @transform_0(%arg0: i32) -> (i32, i32, i32) {
    %c0_i32 = arith.constant 0 : i32
    %c0_i32_0 = arith.constant 0 : i32
    %c0_i32_1 = arith.constant 0 : i32
    return %arg0, %c0_i32, %c0_i32_0 : i32, i32, i32
  }
  func.func @transform_1(%arg0: i32) -> (i32, i32) {
    %c0_i32 = arith.constant 0 : i32
    %c0_i32_0 = arith.constant 0 : i32
    %c0_i32_1 = arith.constant 0 : i32
    return %c0_i32, %c0_i32_0 : i32, i32
  }
}

</mosaic_0001>

<llo_original>
// kernel: tpu_custom_call.1
$region0: #{tpu_custom_call.1}
  #allocation0 [shape = 'u32[]', space=smem, size = 0x4, offset = 0x4, fixed_abs, tag = 'smem constant byte address 0x4 - core index']
  #allocation1 [shape = 'u32[144,128]{1,0:T(1,128)}', space=vmem, size = 0x12000, scoped, tag = 'internal scratch']
  #allocation2 [shape = 'f32[2,4,256]{2,1,0:T(4,128)}', space=vmem, size = 0x2000, scoped, tag = 'scratch operand']
  %s0 = inlined_call_operand.hbm [shape: f32[2,4,256], index: 0, kind: input, shape index: {}]
  %s1 = inlined_call_operand.vmem [shape: f32[4,2], index: 1, kind: output, shape index: {}]
  %s2 = sld [smem:[#allocation0]]
  $region49: #{tpu_custom_call.1} parent=0
    _
  %s4 = ssub.s32 1, %s2
  %s5 = scalar_select 0, %s4, %s2
  $region1: #{tpu_custom_call.1} parent=0
    #allocation3 [shape = 'u8[8192]{0}', space=vmem, size = 0x2000, scoped, tag = 'input window, operand 0']
    #allocation4 [shape = 's32[2]{0}', space=sflag, size = 0x8, scoped, tag = 'scoped memory for tpu_custom_call.1']
    %6 = vsyncpa [#allocation4], 0
    %s7 = scalar_lea.sflag [#allocation4], 1
    %8 = vsyncpa %s7, 0
    loop: start=0, step=1, limit=4
    $region2: #{tpu_custom_call.1} parent=1 // loop_pre_header
      _
    $region3: #{tpu_custom_call.1} parent=1 // loop_header
      %s10 = sphi 0, %s14
      %p11 = scmp.ge.s32.totalorder %s10, 4
      %s20 = sphi 0, %s22
      %s23 = sphi 0, %s20
      %s24 = sphi 0, %s23
      %s40 = sphi 0, %s24
      %s44 = sphi 0, %s44
      %s46 = sphi 0, %s44
      %s47 = sphi 0, %s46
      %s61 = sphi 0, %s47
    $region4: #{tpu_custom_call.1} parent=1 // loop_header_branch
      %13 = sbr.rel (%p11) target = $region8
    $region5: #{tpu_custom_call.1} parent=1 // loop_body
      %s15 = ssub.s32 %s10, 1
      %s16 = ssub.s32 %s10, 2
      %s17 = sadd.s32 %s10, 1
      %s18 = ssub.s32 %s10, %s17
      %p19 = scmp.eq.s32.totalorder %s18, 0
      %s21 = sadd.s32 %s20, 1
      %s22 = scalar_select %p19, %s20, %s21
      %p25 = pneg %p19
      %p26 = scmp.eq.s32.totalorder %s10, 1
      %p27 = por %p25, %p26
      %p28 = scmp.ne.s32.totalorder %s20, %s23
      %p29 = scmp.eq.s32.totalorder %s10, 0
      %p30 = por %p28, %p29
      %p31 = scmp.ne.s32.totalorder %s20, %s23
      %p32 = scmp.eq.s32.totalorder %s15, 1
      %p33 = por %p31, %p32
      %p34 = scmp.ne.s32.totalorder %s23, %s24
      %p35 = scmp.eq.s32.totalorder %s15, 0
      %p36 = por %p34, %p35
      %p37 = scmp.ne.s32.totalorder %s23, %s24
      %p38 = scmp.eq.s32.totalorder %s16, 1
      %p39 = por %p37, %p38
      %p41 = scmp.ne.s32.totalorder %s24, %s40
      %p42 = scmp.eq.s32.totalorder %s16, 0
      %p43 = por %p41, %p42
      %s45 = sadd.s32 %s44, 1
      %p48 = scmp.eq.s32.totalorder %s10, 1
      %p49 = scmp.ne.s32.totalorder %s44, %s46
      %p50 = scmp.eq.s32.totalorder %s10, 0
      %p51 = por %p49, %p50
      %p52 = scmp.ne.s32.totalorder %s44, %s46
      %p53 = scmp.eq.s32.totalorder %s15, 1
      %p54 = por %p52, %p53
      %p55 = scmp.ne.s32.totalorder %s46, %s47
      %p56 = scmp.eq.s32.totalorder %s15, 0
      %p57 = por %p55, %p56
      %p58 = scmp.ne.s32.totalorder %s46, %s47
      %p59 = scmp.eq.s32.totalorder %s16, 1
      %p60 = por %p58, %p59
      %p62 = scmp.ne.s32.totalorder %s47, %s61
      %p63 = scmp.eq.s32.totalorder %s16, 0
      %p64 = por %p62, %p63
      %p65 = scmp.le.s32.totalorder 1, %s10
      %p66 = scmp.lt.s32.totalorder %s10, 3
      %p67 = pnand %p65, %p66
      %p68 = pneg %p67
      // Predicated region
      $region9: #{tpu_custom_call.1} parent=5 // pred_check
        _
      $region10: #{tpu_custom_call.1} parent=5 // pred_check_branch
        %70 = sbr.rel (%p67) target = $region12
      $region11: #{tpu_custom_call.1} parent=5 // pred_region
        %s71 = ssub.s32 %s10, 1
      $region12: #{tpu_custom_call.1} parent=5 // pred_fallthru
        _
      %p72 = scmp.lt.s32.totalorder %s10, 2
      // Predicated region
      $region13: #{tpu_custom_call.1} parent=5 // pred_check
        %p73 = pneg %p72
      $region14: #{tpu_custom_call.1} parent=5 // pred_check_branch
        %75 = sbr.rel (%p73) target = $region16
      $region15: #{tpu_custom_call.1} parent=5 // pred_region
        // Predicated region
        $region17: #{tpu_custom_call.1} parent=15 // pred_check
          %p76 = pneg %p30
        $region18: #{tpu_custom_call.1} parent=15 // pred_check_branch
          %78 = sbr.rel (%p76) target = $region20
        $region19: #{tpu_custom_call.1} parent=15 // pred_region
          %s79 = sand.u32 %s20, 1
          %s80 = scalar_lea.sflag [#allocation4], %s79
          %s81 = sand.u32 %s20, 1
          %s82 = smul.addr %s81, 8
          %s83 = scalar_lea.vmem [#allocation3], %s82
          %s85 = ssub.s32 128, 128
          %86 = vsyncadd %s80, %s85
          %s87 = smul.addr %s10, 2
          %s88 = smul.addr %s87, 64
          %s89 = scalar_lea.hbm %s0, %s88
          %s91 = sshll.u32 %s83, 4
          %s92 = int_to_ptr.vmem [resolvable:$true] %s91
          %94 = dma.hbm_to_vmem [thread:$0]  %s89, 128, %s92, %s80
        $region20: #{tpu_custom_call.1} parent=15 // pred_fallthru
          _
      $region16: #{tpu_custom_call.1} parent=5 // pred_fallthru
        _
      %p95 = scmp.le.s32.totalorder 1, %s10
      %p96 = scmp.lt.s32.totalorder %s10, 3
      %p97 = pnand %p95, %p96
      %p98 = pneg %p97
      // Predicated region
      $region21: #{tpu_custom_call.1} parent=5 // pred_check
        _
      $region22: #{tpu_custom_call.1} parent=5 // pred_check_branch
        %100 = sbr.rel (%p97) target = $region24
      $region23: #{tpu_custom_call.1} parent=5 // pred_region
        %s101 = ssub.s32 %s10, 1
        %s102 = sand.u32 %s23, 1
        %s103 = scalar_lea.sflag [#allocation4], %s102
        %s104 = sand.u32 %s23, 1
        %s105 = smul.addr %s104, 8
        %s106 = scalar_lea.vmem [#allocation3], %s105
        // Predicated region
        $region25: #{tpu_custom_call.1} parent=23 // pred_check
          %p107 = pneg %p36
        $region26: #{tpu_custom_call.1} parent=23 // pred_check_branch
          %109 = sbr.rel (%p107) target = $region28
        $region27: #{tpu_custom_call.1} parent=23 // pred_region
          %110 = dma.done %s103, 128
        $region28: #{tpu_custom_call.1} parent=23 // pred_fallthru
          _
        %s111 = sand.u32 %s23, 1
        %s112 = scalar_lea.sflag [#allocation4], %s111
        %s113 = sand.u32 %s23, 1
        %s114 = smul.addr %s113, 8
        %s115 = scalar_lea.vmem [#allocation3], %s114
        %p116 = pneg %p36
        %p117 = pneg %p33
        %p118 = pneg %p57
        %p119 = pneg %p54
        %v120 = vld [vmem:[%s106] sm:$0xff]
        %p121 = scmp.eq.s32.totalorder %s15, 0
        // Predicated region
        $region29: #{tpu_custom_call.1} parent=23 // pred_check
          %p122 = pneg %p121
        $region30: #{tpu_custom_call.1} parent=23 // pred_check_branch
          %124 = sbr.rel (%p122) target = $region32
        $region31: #{tpu_custom_call.1} parent=23 // pred_region
          %125 = vst [vmem:[#allocation2] sm:$0xff] 0.0
          %126 = vst [vmem:[#allocation2 + $0x8] sm:$0xff] 0.0
        $region32: #{tpu_custom_call.1} parent=23 // pred_fallthru
          _
        %v127 = vld [vmem:[#allocation2] sm:$0xff]
        %v128 = vadd.f32 %v120, 0.0
        %v129 = vadd.f32 %v127, %v128
        %130 = vst [vmem:[#allocation2] sm:$0xff] %v129
        %s131 = scalar_lea.vmem [#allocation2], 8
        %v132 = vld [vmem:[%s131] sm:$0xff]
        %v133 = vmul.f32 %v120, %v120
        %v134 = vadd.f32 %v133, 0.0
        %v135 = vadd.f32 %v132, %v134
        %136 = vst [vmem:[%s131] sm:$0xff] %v135
        %p137 = scmp.eq.s32.totalorder %s15, 1
        // Predicated region
        $region33: #{tpu_custom_call.1} parent=23 // pred_check
          %p138 = pneg %p137
        $region34: #{tpu_custom_call.1} parent=23 // pred_check_branch
          %140 = sbr.rel (%p138) target = $region36
        $region35: #{tpu_custom_call.1} parent=23 // pred_region
          %v141 = vld [vmem:[#allocation2] sm:$0xff]
          %v143 = vcombine.high %v141, %v141
          %vm145 = vcmask 1043456
          %v146 = vsel %vm145, %v141, 0.0
          %v147 = vsel %vm145, %v143, 0.0
          %v148 = vadd.f32 %v146, %v147
          %149 = vadd.xlane.f32.xlu0 %v148
          %v150 = vpop.xlane.xlu0 %149
          %v151 = vld [vmem:[%s131] sm:$0xff]
          %v153 = vcombine.high %v151, %v151
          %v155 = vsel %vm145, %v151, 0.0
          %v156 = vsel %vm145, %v153, 0.0
          %v157 = vadd.f32 %v155, %v156
          %158 = vadd.xlane.f32.xlu0 %v157
          %v159 = vpop.xlane.xlu0 %158
          %vm160 = vcmask 7168
          %v161 = vsel %vm160, %v150, %v159
          %vm162 = vcmask 11264
          %163 = vst.msk [vmem:[%s1] sm:$0xf] %vm162, %v161
        $region36: #{tpu_custom_call.1} parent=23 // pred_fallthru
          _
        // Predicated region
        $region37: #{tpu_custom_call.1} parent=23 // pred_check
          %p164 = pneg %p54
        $region38: #{tpu_custom_call.1} parent=23 // pred_check_branch
          %166 = sbr.rel (%p164) target = $region40
        $region39: #{tpu_custom_call.1} parent=23 // pred_region
          _
        $region40: #{tpu_custom_call.1} parent=23 // pred_fallthru
          _
        // Predicated region
        $region41: #{tpu_custom_call.1} parent=23 // pred_check
          %p167 = pneg %p54
        $region42: #{tpu_custom_call.1} parent=23 // pred_check_branch
          %169 = sbr.rel (%p167) target = $region44
        $region43: #{tpu_custom_call.1} parent=23 // pred_region
          _
        $region44: #{tpu_custom_call.1} parent=23 // pred_fallthru
          _
      $region24: #{tpu_custom_call.1} parent=5 // pred_fallthru
        _
      %p170 = scmp.le.s32.totalorder 2, %s10
      // Predicated region
      $region45: #{tpu_custom_call.1} parent=5 // pred_check
        %p171 = pneg %p170
      $region46: #{tpu_custom_call.1} parent=5 // pred_check_branch
        %173 = sbr.rel (%p171) target = $region48
      $region47: #{tpu_custom_call.1} parent=5 // pred_region
        %s174 = ssub.s32 %s10, 2
      $region48: #{tpu_custom_call.1} parent=5 // pred_fallthru
        _
    $region6: #{tpu_custom_call.1} parent=1 // loop_footer
      %s14 = sadd.s32 1, %s10
    $region7: #{tpu_custom_call.1} parent=1 // loop_footer_branch
      %9 = sbr.rel target = $region3
    $region8: #{tpu_custom_call.1} parent=1 // loop_exit
      _
    %175 = vsyncpa [#allocation4], 1
    %s176 = scalar_lea.sflag [#allocation4], 1
    %177 = vsyncpa %s176, 1

</llo_original>
